<compile_context>
chip_gen: v7x
topology: tpu7x:2x2x1
jax: 0.10.0
libtpu: 0.0.40
codegen_flags: <defaults>
</compile_context>

<pallas_src>
import jax
import jax.numpy as jnp
from jax.experimental import pallas as pl
from jax.experimental.pallas import tpu as pltpu

_LANE = 128     # TPU lane width (last tile dim)
_SUBLANE = 8    # TPU sublane width (second-minor tile dim)


def _round_up(x, m):
    return ((x + m - 1) // m) * m


def _vmem_capacity_bytes():
    """Per-core VMEM capacity; falls back to the v7x floor (64 MiB)."""
    try:
        return int(pltpu.get_tpu_info().vmem_capacity_bytes)
    except Exception:
        return 64 * 1024 * 1024


def _masked_resblock_kernel(x_ref, w0_ref, b0_ref, w1_ref, b1_ref, o_ref):
    """One row-tile of the fused residual block.

    x_ref  : (tn, Fp) activations (f32)
    w*_ref : (Fp, Fp) pre-masked, pre-transposed weights ([in, out] layout)
    b*_ref : (1, Fp)  biases (f32)
    o_ref  : (tn, Fp) output (f32)
    """
    x = x_ref[...]

    # activation(input)
    h = jnp.maximum(x, 0.0)

    # layer 0: h @ (mask*W0).T + b0 -- weights already masked & transposed.
    h = jnp.dot(h.astype(w0_ref.dtype), w0_ref[...],
                preferred_element_type=jnp.float32) + b0_ref[...]

    # activation
    h = jnp.maximum(h, 0.0)

    # layer 1
    h = jnp.dot(h.astype(w1_ref.dtype), w1_ref[...],
                preferred_element_type=jnp.float32) + b1_ref[...]

    # residual add (f32)
    o_ref[...] = (x + h).astype(o_ref.dtype)


def masked_residual_block(x, w0, b0, w1, b1, mask, *, tile_n=1024,
                          compute_dtype=None, vmem_limit_bytes=None):
    """Fused MaskedResidualBlock forward.

    x     : [N, F] float32 activations
    w0,w1 : [F, F] weights, PyTorch [out, in] layout
    b0,b1 : [F] biases
    mask  : [F, F] mask, [out, in] layout (same mask on both layers)
    compute_dtype: optional MXU operand dtype (e.g. jnp.bfloat16 on v6e/v7x
                   when F is large); accumulation / bias / residual stay f32.
    """
    N, F = x.shape
    wdt = compute_dtype if compute_dtype is not None else x.dtype

    # ---- hoist grid-invariant work out of the kernel -------------------------
    # masked + transposed weights, [in, out] layout -> kernel does plain h @ W.
    # (For very large F on v7x prefer compute_dtype=bf16 so both resident FxF
    #  weights fit the 64 MiB VMEM.)
    w0mt = (mask * w0).T.astype(wdt)
    w1mt = (mask * w1).T.astype(wdt)

    # ---- feature-dim handling -------------------------------------------------
    # A block whose last dim equals the full array dim is always legal, so we
    # only lane-pad when F > 128 and misaligned (keeps lane-dense stores there
    # without inflating HBM traffic for small F).
    if F > _LANE and F % _LANE != 0:
        Fp = _round_up(F, _LANE)
    else:
        Fp = F
    pad_f = Fp - F
    if pad_f:
        # Zero padding keeps semantics exact; padded output cols sliced off.
        w0mt = jnp.pad(w0mt, ((0, pad_f), (0, pad_f)))
        w1mt = jnp.pad(w1mt, ((0, pad_f), (0, pad_f)))
        xk = jnp.pad(x, ((0, 0), (0, pad_f)))
        b0k = jnp.pad(b0, (0, pad_f)).reshape(1, Fp).astype(x.dtype)
        b1k = jnp.pad(b1, (0, pad_f)).reshape(1, Fp).astype(x.dtype)
    else:
        xk = x
        b0k = b0.reshape(1, Fp).astype(x.dtype)
        b1k = b1.reshape(1, Fp).astype(x.dtype)

    # ---- row tiling -----------------------------------------------------------
    # Multiple of 8 sublanes; capped so the "parallel" axis has >= 2 steps
    # (feeds both v7x TensorCores).  Ragged last tile is handled by Pallas
    # boundary masking -> no pad of N and no output slice along N.
    tn = max(_SUBLANE,
             min(_round_up(int(tile_n), _SUBLANE),
                 _round_up(pl.cdiv(N, 2), _SUBLANE)))
    grid = (pl.cdiv(N, tn),)

    # ---- VMEM budget & cost hint ----------------------------------------------
    itx = jnp.dtype(x.dtype).itemsize
    itw = jnp.dtype(wdt).itemsize
    if vmem_limit_bytes is None:
        need = (2 * tn * Fp * itx          # x row tile, double-buffered
                + 2 * tn * Fp * itx        # out row tile, double-buffered
                + 2 * 2 * Fp * Fp * itw    # two resident weights (2 bufs each)
                + 2 * 2 * Fp * itx)        # two biases
        cap = _vmem_capacity_bytes()
        vmem_limit_bytes = int(min(max(need + (8 << 20), 32 << 20),
                                   cap - (8 << 20)))

    cost = pl.CostEstimate(
        flops=4 * N * Fp * Fp + 6 * N * Fp,              # 2 matmuls + eltwise
        transcendentals=0,
        bytes_accessed=int(2 * N * F * itx + 2 * F * F * itw + 2 * F * itx),
    )

    full_w = pl.BlockSpec((Fp, Fp), lambda i: (0, 0))    # grid-invariant weights
    full_b = pl.BlockSpec((1, Fp), lambda i: (0, 0))     # grid-invariant biases

    out = pl.pallas_call(
        _masked_resblock_kernel,
        out_shape=jax.ShapeDtypeStruct((N, Fp), x.dtype),
        grid=grid,
        in_specs=[
            pl.BlockSpec((tn, Fp), lambda i: (i, 0)),    # x row tile
            full_w,                                      # (mask*W0).T [in,out]
            full_b,                                      # b0
            full_w,                                      # (mask*W1).T [in,out]
            full_b,                                      # b1
        ],
        out_specs=pl.BlockSpec((tn, Fp), lambda i: (i, 0)),
        compiler_params=pltpu.CompilerParams(
            dimension_semantics=("parallel",),           # megacore-shardable
            vmem_limit_bytes=vmem_limit_bytes,
        ),
        cost_estimate=cost,
    )(xk, w0mt, b0k, w1mt, b1k)

    if pad_f:
        out = out[:, :F]
    return out


def _reference(x, w0, b0, w1, b1, mask):
    h = jnp.maximum(x, 0.0)
    h = h @ (mask * w0).T + b0
    h = jnp.maximum(h, 0.0)
    h = h @ (mask * w1).T + b1
    return x + h


if __name__ == "__main__":
    # Small shapes consistent with the module: batch N, hidden F (in == out).
    N, F = 256, 32
    key = jax.random.PRNGKey(0)
    kx, kw0, kb0, kw1, kb1 = jax.random.split(key, 5)

    bound = 1.0 / jnp.sqrt(F)
    x = jax.random.normal(kx, (N, F), dtype=jnp.float32)
    w0 = jax.random.uniform(kw0, (F, F), jnp.float32, -bound, bound)
    b0 = jax.random.uniform(kb0, (F,), jnp.float32, -bound, bound)
    w1 = jax.random.uniform(kw1, (F, F), jnp.float32, -bound, bound)
    b1 = jax.random.uniform(kb1, (F,), jnp.float32, -bound, bound)

    # Deterministic autoregressive-style mask stored [out, in], like the
    # PyTorch buffer (set_mask transposes an [in, out] numpy mask).  The same
    # mask is applied to both layers, as in MaskedResidualBlock.set_mask.
    mask = jnp.tril(jnp.ones((F, F), dtype=jnp.float32))

    fwd = jax.jit(masked_residual_block)
    out = jax.block_until_ready(fwd(x, w0, b0, w1, b1, mask))

    ref = _reference(x, w0, b0, w1, b1, mask)
    assert out.shape == (N, F)
    assert jnp.allclose(out, ref, atol=1e-5, rtol=1e-5), "mismatch vs reference"

    # TODO(synk): optional bf16 path (compute_dtype=jnp.bfloat16) for large F
    # on v6e/v7x changes numerics slightly and is not asserted against the f32
    # reference here.

    print("KERNEL_OK")
</pallas_src>

<mosaic_0001>
module attributes {stable_mosaic.version = 11 : i64} {
  func.func @_masked_resblock_kernel(%arg0: i32, %arg1: memref<128x32xf32, #tpu.memory_space<vmem>>, %arg2: memref<32x32xf32, #tpu.memory_space<vmem>>, %arg3: memref<1x32xf32, #tpu.memory_space<vmem>>, %arg4: memref<32x32xf32, #tpu.memory_space<vmem>>, %arg5: memref<1x32xf32, #tpu.memory_space<vmem>>, %arg6: memref<128x32xf32, #tpu.memory_space<vmem>>) attributes {dimension_semantics = [#tpu.dimension_semantics<parallel>], iteration_bounds = array<i64: 2>, scalar_prefetch = 0 : i64, scratch_operands = 0 : i64, tpu.core_type = #tpu.core_type<tc>, window_params = [{transform_indices = @transform_0, window_bounds = array<i64: 128, 32>}, {pipeline_mode = #tpu.pipeline_mode<synchronous>, transform_indices = @transform_1, window_bounds = array<i64: 32, 32>}, {pipeline_mode = #tpu.pipeline_mode<synchronous>, transform_indices = @transform_2, window_bounds = array<i64: 1, 32>}, {pipeline_mode = #tpu.pipeline_mode<synchronous>, transform_indices = @transform_3, window_bounds = array<i64: 32, 32>}, {pipeline_mode = #tpu.pipeline_mode<synchronous>, transform_indices = @transform_4, window_bounds = array<i64: 1, 32>}, {transform_indices = @transform_5, window_bounds = array<i64: 128, 32>}]} {
    %c0 = arith.constant 0 : index
    %c0_0 = arith.constant 0 : index
    %0 = vector.load %arg1[%c0, %c0_0] : memref<128x32xf32, #tpu.memory_space<vmem>>, vector<128x32xf32>
    %cst = arith.constant 0.000000e+00 : f32
    %1 = vector.broadcast %cst : f32 to vector<128x32xf32>
    %2 = arith.maximumf %0, %1 : vector<128x32xf32>
    %c0_1 = arith.constant 0 : index
    %c0_2 = arith.constant 0 : index
    %3 = vector.load %arg2[%c0_1, %c0_2] : memref<32x32xf32, #tpu.memory_space<vmem>>, vector<32x32xf32>
    %cst_3 = arith.constant dense<0.000000e+00> : vector<128x32xf32>
    %4 = tpu.matmul %2, %3, %cst_3 {dimension_numbers = #tpu.dot_dimension_numbers<[1], [0], [0], [1], [0, 0, 1, 1], [], []>} : vector<128x32xf32>, vector<32x32xf32>, vector<128x32xf32> -> vector<128x32xf32>
    %c0_4 = arith.constant 0 : index
    %c0_5 = arith.constant 0 : index
    %5 = vector.load %arg3[%c0_4, %c0_5] : memref<1x32xf32, #tpu.memory_space<vmem>>, vector<1x32xf32>
    %6 = vector.broadcast %5 : vector<1x32xf32> to vector<128x32xf32>
    %7 = arith.addf %4, %6 : vector<128x32xf32>
    %cst_6 = arith.constant 0.000000e+00 : f32
    %8 = vector.broadcast %cst_6 : f32 to vector<128x32xf32>
    %9 = arith.maximumf %7, %8 : vector<128x32xf32>
    %c0_7 = arith.constant 0 : index
    %c0_8 = arith.constant 0 : index
    %10 = vector.load %arg4[%c0_7, %c0_8] : memref<32x32xf32, #tpu.memory_space<vmem>>, vector<32x32xf32>
    %cst_9 = arith.constant dense<0.000000e+00> : vector<128x32xf32>
    %11 = tpu.matmul %9, %10, %cst_9 {dimension_numbers = #tpu.dot_dimension_numbers<[1], [0], [0], [1], [0, 0, 1, 1], [], []>} : vector<128x32xf32>, vector<32x32xf32>, vector<128x32xf32> -> vector<128x32xf32>
    %c0_10 = arith.constant 0 : index
    %c0_11 = arith.constant 0 : index
    %12 = vector.load %arg5[%c0_10, %c0_11] : memref<1x32xf32, #tpu.memory_space<vmem>>, vector<1x32xf32>
    %13 = vector.broadcast %12 : vector<1x32xf32> to vector<128x32xf32>
    %14 = arith.addf %11, %13 : vector<128x32xf32>
    %15 = arith.addf %0, %14 : vector<128x32xf32>
    %c0_12 = arith.constant 0 : index
    %c0_13 = arith.constant 0 : index
    %16 = vector.load %arg6[%c0_12, %c0_13] : memref<128x32xf32, #tpu.memory_space<vmem>>, vector<128x32xf32>
    tpu.vector_store %arg6[%c0_12, %c0_13], %15 {strides = array<i32>} : memref<128x32xf32, #tpu.memory_space<vmem>>, vector<128x32xf32>,
    return
  }
  func.func @transform_0(%arg0: i32) -> (i32, i32) {
    %c0_i32 = arith.constant 0 : i32
    %c0_i32_0 = arith.constant 0 : i32
    return %arg0, %c0_i32 : i32, i32
  }
  func.func @transform_1(%arg0: i32) -> (i32, i32) {
    %c0_i32 = arith.constant 0 : i32
    %c0_i32_0 = arith.constant 0 : i32
    %c0_i32_1 = arith.constant 0 : i32
    return %c0_i32, %c0_i32_0 : i32, i32
  }
  func.func @transform_2(%arg0: i32) -> (i32, i32) {
    %c0_i32 = arith.constant 0 : i32
    %c0_i32_0 = arith.constant 0 : i32
    %c0_i32_1 = arith.constant 0 : i32
    return %c0_i32, %c0_i32_0 : i32, i32
  }
  func.func @transform_3(%arg0: i32) -> (i32, i32) {
    %c0_i32 = arith.constant 0 : i32
    %c0_i32_0 = arith.constant 0 : i32
    %c0_i32_1 = arith.constant 0 : i32
    return %c0_i32, %c0_i32_0 : i32, i32
  }
  func.func @transform_4(%arg0: i32) -> (i32, i32) {
    %c0_i32 = arith.constant 0 : i32
    %c0_i32_0 = arith.constant 0 : i32
    %c0_i32_1 = arith.constant 0 : i32
    return %c0_i32, %c0_i32_0 : i32, i32
  }
  func.func @transform_5(%arg0: i32) -> (i32, i32) {
    %c0_i32 = arith.constant 0 : i32
    %c0_i32_0 = arith.constant 0 : i32
    return %arg0, %c0_i32 : i32, i32
  }
}

</mosaic_0001>

<llo_original>
// kernel: masked_residual_block.1
$region0: #{masked_residual_block.1}
  #allocation0 [shape = 'u32[]', space=smem, size = 0x4, offset = 0x4, fixed_abs, tag = 'smem constant byte address 0x4 - core index']
  #allocation1 [shape = 'u32[144,128]{1,0:T(1,128)}', space=vmem, size = 0x12000, scoped, tag = 'internal scratch']
  %s0 = inlined_call_operand.vmem [shape: f32[256,32], index: 0, kind: input, shape index: {}]
  %s1 = inlined_call_operand.vmem [shape: f32[32,32], index: 1, kind: input, shape index: {}]
  %s2 = inlined_call_operand.vmem [shape: f32[1,32], index: 2, kind: input, shape index: {}]
  %s3 = inlined_call_operand.vmem [shape: f32[32,32], index: 3, kind: input, shape index: {}]
  %s4 = inlined_call_operand.vmem [shape: f32[1,32], index: 4, kind: input, shape index: {}]
  %s5 = inlined_call_operand.vmem [shape: f32[256,32], index: 5, kind: output, shape index: {}]
  %s6 = sld [smem:[#allocation0]]
  $region53: #{masked_residual_block.1} parent=0
    _
  %s8 = ssub.s32 1, %s6
  %s9 = scalar_select 0, %s8, %s6
  loop: start=0, step=1, limit=4
  $region2: #{masked_residual_block.1} parent=0 // loop_pre_header
    _
  $region3: #{masked_residual_block.1} parent=0 // loop_header
    %s11 = sphi 0, %s15
    %p12 = scmp.ge.s32.totalorder %s11, 4
    %s21 = sphi 0, %s23
    %s24 = sphi 0, %s21
    %s25 = sphi 0, %s24
    %s41 = sphi 0, %s25
    %s45 = sphi 0, %s45
    %s47 = sphi 0, %s45
    %s48 = sphi 0, %s47
    %s62 = sphi 0, %s48
    %s66 = sphi 0, %s66
    %s68 = sphi 0, %s66
    %s69 = sphi 0, %s68
    %s83 = sphi 0, %s69
    %s87 = sphi 0, %s87
    %s89 = sphi 0, %s87
    %s90 = sphi 0, %s89
    %s104 = sphi 0, %s90
    %s108 = sphi 0, %s108
    %s110 = sphi 0, %s108
    %s111 = sphi 0, %s110
    %s125 = sphi 0, %s111
    %s131 = sphi 0, %s133
    %s134 = sphi 0, %s131
    %s135 = sphi 0, %s134
    %s151 = sphi 0, %s135
  $region4: #{masked_residual_block.1} parent=0 // loop_header_branch
    %14 = sbr.rel (%p12) target = $region8
  $region5: #{masked_residual_block.1} parent=0 // loop_body
    %s16 = ssub.s32 %s11, 1
    %s17 = ssub.s32 %s11, 2
    %s18 = sadd.s32 %s11, 1
    %s19 = ssub.s32 %s11, %s18
    %p20 = scmp.eq.s32.totalorder %s19, 0
    %s22 = sadd.s32 %s21, 1
    %s23 = scalar_select %p20, %s21, %s22
    %p26 = pneg %p20
    %p27 = scmp.eq.s32.totalorder %s11, 1
    %p28 = por %p26, %p27
    %p29 = scmp.ne.s32.totalorder %s21, %s24
    %p30 = scmp.eq.s32.totalorder %s11, 0
    %p31 = por %p29, %p30
    %p32 = scmp.ne.s32.totalorder %s21, %s24
    %p33 = scmp.eq.s32.totalorder %s16, 1
    %p34 = por %p32, %p33
    %p35 = scmp.ne.s32.totalorder %s24, %s25
    %p36 = scmp.eq.s32.totalorder %s16, 0
    %p37 = por %p35, %p36
    %p38 = scmp.ne.s32.totalorder %s24, %s25
    %p39 = scmp.eq.s32.totalorder %s17, 1
    %p40 = por %p38, %p39
    %p42 = scmp.ne.s32.totalorder %s25, %s41
    %p43 = scmp.eq.s32.totalorder %s17, 0
    %p44 = por %p42, %p43
    %s46 = sadd.s32 %s45, 1
    %p49 = scmp.eq.s32.totalorder %s11, 1
    %p50 = scmp.ne.s32.totalorder %s45, %s47
    %p51 = scmp.eq.s32.totalorder %s11, 0
    %p52 = por %p50, %p51
    %p53 = scmp.ne.s32.totalorder %s45, %s47
    %p54 = scmp.eq.s32.totalorder %s16, 1
    %p55 = por %p53, %p54
    %p56 = scmp.ne.s32.totalorder %s47, %s48
    %p57 = scmp.eq.s32.totalorder %s16, 0
    %p58 = por %p56, %p57
    %p59 = scmp.ne.s32.totalorder %s47, %s48
    %p60 = scmp.eq.s32.totalorder %s17, 1
    %p61 = por %p59, %p60
    %p63 = scmp.ne.s32.totalorder %s48, %s62
    %p64 = scmp.eq.s32.totalorder %s17, 0
    %p65 = por %p63, %p64
    %s67 = sadd.s32 %s66, 1
    %p70 = scmp.eq.s32.totalorder %s11, 1
    %p71 = scmp.ne.s32.totalorder %s66, %s68
    %p72 = scmp.eq.s32.totalorder %s11, 0
    %p73 = por %p71, %p72
    %p74 = scmp.ne.s32.totalorder %s66, %s68
    %p75 = scmp.eq.s32.totalorder %s16, 1
    %p76 = por %p74, %p75
    %p77 = scmp.ne.s32.totalorder %s68, %s69
    %p78 = scmp.eq.s32.totalorder %s16, 0
    %p79 = por %p77, %p78
    %p80 = scmp.ne.s32.totalorder %s68, %s69
    %p81 = scmp.eq.s32.totalorder %s17, 1
    %p82 = por %p80, %p81
    %p84 = scmp.ne.s32.totalorder %s69, %s83
    %p85 = scmp.eq.s32.totalorder %s17, 0
    %p86 = por %p84, %p85
    %s88 = sadd.s32 %s87, 1
    %p91 = scmp.eq.s32.totalorder %s11, 1
    %p92 = scmp.ne.s32.totalorder %s87, %s89
    %p93 = scmp.eq.s32.totalorder %s11, 0
    %p94 = por %p92, %p93
    %p95 = scmp.ne.s32.totalorder %s87, %s89
    %p96 = scmp.eq.s32.totalorder %s16, 1
    %p97 = por %p95, %p96
    %p98 = scmp.ne.s32.totalorder %s89, %s90
    %p99 = scmp.eq.s32.totalorder %s16, 0
    %p100 = por %p98, %p99
    %p101 = scmp.ne.s32.totalorder %s89, %s90
    %p102 = scmp.eq.s32.totalorder %s17, 1
    %p103 = por %p101, %p102
    %p105 = scmp.ne.s32.totalorder %s90, %s104
    %p106 = scmp.eq.s32.totalorder %s17, 0
    %p107 = por %p105, %p106
    %s109 = sadd.s32 %s108, 1
    %p112 = scmp.eq.s32.totalorder %s11, 1
    %p113 = scmp.ne.s32.totalorder %s108, %s110
    %p114 = scmp.eq.s32.totalorder %s11, 0
    %p115 = por %p113, %p114
    %p116 = scmp.ne.s32.totalorder %s108, %s110
    %p117 = scmp.eq.s32.totalorder %s16, 1
    %p118 = por %p116, %p117
    %p119 = scmp.ne.s32.totalorder %s110, %s111
    %p120 = scmp.eq.s32.totalorder %s16, 0
    %p121 = por %p119, %p120
    %p122 = scmp.ne.s32.totalorder %s110, %s111
    %p123 = scmp.eq.s32.totalorder %s17, 1
    %p124 = por %p122, %p123
    %p126 = scmp.ne.s32.totalorder %s111, %s125
    %p127 = scmp.eq.s32.totalorder %s17, 0
    %p128 = por %p126, %p127
    %s129 = ssub.s32 %s11, %s18
    %p130 = scmp.eq.s32.totalorder %s129, 0
    %s132 = sadd.s32 %s131, 1
    %s133 = scalar_select %p130, %s131, %s132
    %p136 = pneg %p130
    %p137 = scmp.eq.s32.totalorder %s11, 1
    %p138 = por %p136, %p137
    %p139 = scmp.ne.s32.totalorder %s131, %s134
    %p140 = scmp.eq.s32.totalorder %s11, 0
    %p141 = por %p139, %p140
    %p142 = scmp.ne.s32.totalorder %s131, %s134
    %p143 = scmp.eq.s32.totalorder %s16, 1
    %p144 = por %p142, %p143
    %p145 = scmp.ne.s32.totalorder %s134, %s135
    %p146 = scmp.eq.s32.totalorder %s16, 0
    %p147 = por %p145, %p146
    %p148 = scmp.ne.s32.totalorder %s134, %s135
    %p149 = scmp.eq.s32.totalorder %s17, 1
    %p150 = por %p148, %p149
    %p152 = scmp.ne.s32.totalorder %s135, %s151
    %p153 = scmp.eq.s32.totalorder %s17, 0
    %p154 = por %p152, %p153
    %p155 = scmp.le.s32.totalorder 1, %s11
    %p156 = scmp.lt.s32.totalorder %s11, 3
    %p157 = pnand %p155, %p156
    %p158 = pneg %p157
    // Predicated region
    $region9: #{masked_residual_block.1} parent=5 // pred_check
      _
    $region10: #{masked_residual_block.1} parent=5 // pred_check_branch
      %160 = sbr.rel (%p157) target = $region12
    $region11: #{masked_residual_block.1} parent=5 // pred_region
      %s161 = ssub.s32 %s11, 1
      // Predicated region
      $region13: #{masked_residual_block.1} parent=11 // pred_check
        %p162 = pneg %p58
      $region14: #{masked_residual_block.1} parent=11 // pred_check_branch
        %164 = sbr.rel (%p162) target = $region16
      $region15: #{masked_residual_block.1} parent=11 // pred_region
        _
      $region16: #{masked_residual_block.1} parent=11 // pred_fallthru
        _
      // Predicated region
      $region17: #{masked_residual_block.1} parent=11 // pred_check
        %p165 = pneg %p79
      $region18: #{masked_residual_block.1} parent=11 // pred_check_branch
        %167 = sbr.rel (%p165) target = $region20
      $region19: #{masked_residual_block.1} parent=11 // pred_region
        _
      $region20: #{masked_residual_block.1} parent=11 // pred_fallthru
        _
      // Predicated region
      $region21: #{masked_residual_block.1} parent=11 // pred_check
        %p168 = pneg %p100
      $region22: #{masked_residual_block.1} parent=11 // pred_check_branch
        %170 = sbr.rel (%p168) target = $region24
      $region23: #{masked_residual_block.1} parent=11 // pred_region
        _
      $region24: #{masked_residual_block.1} parent=11 // pred_fallthru
        _
      // Predicated region
      $region25: #{masked_residual_block.1} parent=11 // pred_check
        %p171 = pneg %p121
      $region26: #{masked_residual_block.1} parent=11 // pred_check_branch
        %173 = sbr.rel (%p171) target = $region28
      $region27: #{masked_residual_block.1} parent=11 // pred_region
        _
      $region28: #{masked_residual_block.1} parent=11 // pred_fallthru
        _
    $region12: #{masked_residual_block.1} parent=5 // pred_fallthru
      _
    %p174 = scmp.lt.s32.totalorder %s11, 2
    // Predicated region
    $region29: #{masked_residual_block.1} parent=5 // pred_check
      %p175 = pneg %p174
    $region30: #{masked_residual_block.1} parent=5 // pred_check_branch
      %177 = sbr.rel (%p175) target = $region32
    $region31: #{masked_residual_block.1} parent=5 // pred_region
      // Predicated region
      $region33: #{masked_residual_block.1} parent=31 // pred_check
        %p178 = pneg %p31
      $region34: #{masked_residual_block.1} parent=31 // pred_check_branch
        %180 = sbr.rel (%p178) target = $region36
      $region35: #{masked_residual_block.1} parent=31 // pred_region
        %s181 = smul.u32 16, %s11
        %p182 = scmp.lt.s32.totalorder %s181, 31
        %s183 = scalar_select %p182, %s181, 31
        %s184 = smul.addr %s183, 8
        %s185 = scalar_lea.vmem %s0, %s184
        %s186 = smul.u32 16, %s11
      $region36: #{masked_residual_block.1} parent=31 // pred_fallthru
        _
    $region32: #{masked_residual_block.1} parent=5 // pred_fallthru
      _
    %p187 = scmp.le.s32.totalorder 1, %s11
    %p188 = scmp.lt.s32.totalorder %s11, 3
    %p189 = pnand %p187, %p188
    %p190 = pneg %p189
    // Predicated region
    $region37: #{masked_residual_block.1} parent=5 // pred_check
      _
    $region38: #{masked_residual_block.1} parent=5 // pred_check_branch
      %192 = sbr.rel (%p189) target = $region40
    $region39: #{masked_residual_block.1} parent=5 // pred_region
      %s193 = ssub.s32 %s11, 1
      %s194 = smul.u32 16, %s16
      %p195 = scmp.lt.s32.totalorder %s194, 31
      %s196 = scalar_select %p195, %s194, 31
      %s197 = smul.addr %s196, 8
      %s198 = scalar_lea.vmem %s0, %s197
      %p199 = pneg %p37
      %p200 = pneg %p34
      %p201 = pneg %p58
      %p202 = pneg %p55
      %p203 = pneg %p79
      %p204 = pneg %p76
      %p205 = pneg %p100
      %p206 = pneg %p97
      %p207 = pneg %p121
      %p208 = pneg %p118
      %p209 = pneg %p147
      %p210 = pneg %p144
      %s211 = smul.u32 16, %s16
      %p212 = scmp.lt.s32.totalorder %s211, 31
      %s213 = scalar_select %p212, %s211, 31
      %s214 = smul.addr %s213, 8
      %s215 = scalar_lea.vmem %s5, %s214
      %s216 = smul.u32 16, %s16
      %p217 = scmp.lt.s32.totalorder %s216, 31
      %s218 = scalar_select %p217, %s216, 31
      %s219 = smul.addr %s218, 8
      %s220 = scalar_lea.vmem %s0, %s219
      %s221 = smul.u32 16, %s16
      %s222 = smul.u32 16, %s16
      %p223 = scmp.lt.s32.totalorder %s222, 31
      %s224 = scalar_select %p223, %s222, 31
      %s225 = smul.addr %s224, 8
      %s226 = scalar_lea.vmem %s5, %s225
      %s227 = smul.u32 16, %s16
      %v228 = vld [vmem:[%s220] sm:$0xff]
      %v229 = vld [vmem:[%s220 + $0x8] sm:$0xff]
      %v230 = vld [vmem:[%s220 + $0x10] sm:$0xff]
      %v231 = vld [vmem:[%s220 + $0x18] sm:$0xff]
      %v232 = vld [vmem:[%s220 + $0x20] sm:$0xff]
      %v233 = vld [vmem:[%s220 + $0x28] sm:$0xff]
      %v234 = vld [vmem:[%s220 + $0x30] sm:$0xff]
      %v235 = vld [vmem:[%s220 + $0x38] sm:$0xff]
      %v236 = vld [vmem:[%s220 + $0x40] sm:$0xff]
      %v237 = vld [vmem:[%s220 + $0x48] sm:$0xff]
      %v238 = vld [vmem:[%s220 + $0x50] sm:$0xff]
      %v239 = vld [vmem:[%s220 + $0x58] sm:$0xff]
      %v240 = vld [vmem:[%s220 + $0x60] sm:$0xff]
      %v241 = vld [vmem:[%s220 + $0x68] sm:$0xff]
      %v242 = vld [vmem:[%s220 + $0x70] sm:$0xff]
      %v243 = vld [vmem:[%s220 + $0x78] sm:$0xff]
      %v244 = vmax.f32 %v228, 0.0
      %v245 = vmax.f32 %v229, 0.0
      %v246 = vmax.f32 %v230, 0.0
      %v247 = vmax.f32 %v231, 0.0
      %v248 = vmax.f32 %v232, 0.0
      %v249 = vmax.f32 %v233, 0.0
      %v250 = vmax.f32 %v234, 0.0
      %v251 = vmax.f32 %v235, 0.0
      %v252 = vmax.f32 %v236, 0.0
      %v253 = vmax.f32 %v237, 0.0
      %v254 = vmax.f32 %v238, 0.0
      %v255 = vmax.f32 %v239, 0.0
      %v256 = vmax.f32 %v240, 0.0
      %v257 = vmax.f32 %v241, 0.0
      %v258 = vmax.f32 %v242, 0.0
      %v259 = vmax.f32 %v243, 0.0
      %v260 = vld [vmem:[%s1] sm:$0xff]
      %v261 = vld [vmem:[%s1 + $0x8] sm:$0xff]
      %v262 = vld [vmem:[%s1 + $0x10] sm:$0xff]
      %v263 = vld [vmem:[%s1 + $0x18] sm:$0xff]
      %v264 = vld [vmem:[%s2] sm:$0x1]
      %v266 = vlaneseq
      %v267 = vshrl.u32 %v266, 7
      %v268 = vsub.s32 0, %v267
      %v269 = vrot.slane %v264, %v268
      %vm271 = vcmask 261120
      %v273 = vsel %vm271, %v244, 0
      %v276 = vsel %vm271, %v245, 0
      %v279 = vsel %vm271, %v246, 0
      %v282 = vsel %vm271, %v247, 0
      %v285 = vsel %vm271, %v248, 0
      %v288 = vsel %vm271, %v249, 0
      %v291 = vsel %vm271, %v250, 0
      %v294 = vsel %vm271, %v251, 0
      %v297 = vsel %vm271, %v252, 0
      %v300 = vsel %vm271, %v253, 0
      %v303 = vsel %vm271, %v254, 0
      %v306 = vsel %vm271, %v255, 0
      %v309 = vsel %vm271, %v256, 0
      %v312 = vsel %vm271, %v257, 0
      %v315 = vsel %vm271, %v258, 0
      %v318 = vsel %vm271, %v259, 0
      %320 = vmatprep.subr.mxu0 0.0
      %321 = vmatpush1.msra.mxu0 %v260
      %322 = vmatprep.subr.mxu0 0.0
      %323 = vmatpush1.msra.mxu0 %v261
      %324 = vmatprep.subr.mxu0 0.0
      %325 = vmatpush1.msra.mxu0 %v262
      %326 = vmatprep.subr.mxu0 0.0
      %327 = vmatpush1.msra.mxu0 %v263
      %328 = vmatprep.subr.mxu0 0.0
      %329 = vmatpush1.msra.mxu0 0.0
      %330 = vmatprep.subr.mxu0 0.0
      %331 = vmatpush1.msra.mxu0 0.0
      %332 = vmatprep.subr.mxu0 0.0
      %333 = vmatpush1.msra.mxu0 0.0
      %334 = vmatprep.subr.mxu0 0.0
      %335 = vmatpush1.msra.mxu0 0.0
      %336 = vmatprep.subr.mxu0 0.0
      %337 = vmatpush1.msra.mxu0 0.0
      %338 = vmatprep.subr.mxu0 0.0
      %339 = vmatpush1.msra.mxu0 0.0
      %340 = vmatprep.subr.mxu0 0.0
      %341 = vmatpush1.msra.mxu0 0.0
      %342 = vmatprep.subr.mxu0 0.0
      %343 = vmatpush1.msra.mxu0 0.0
      %344 = vmatprep.subr.mxu0 0.0
      %345 = vmatpush1.msra.mxu0 0.0
      %346 = vmatprep.subr.mxu0 0.0
      %347 = vmatpush1.msra.mxu0 0.0
      %348 = vmatprep.subr.mxu0 0.0
      %349 = vmatpush1.msra.mxu0 0.0
      %350 = vmatprep.subr.mxu0 0.0
      %351 = vmatpush1.msra.mxu0 0.0
      %352 = vmatprep.subr.mxu0 0.0
      %353 = vmatpush1.msra.mxu0 0.0
      %354 = vmatprep.subr.mxu0 0.0
      %355 = vmatpush1.msra.mxu0 0.0
      %356 = vmatprep.subr.mxu0 0.0
      %357 = vmatpush1.msra.mxu0 0.0
      %358 = vmatprep.subr.mxu0 0.0
      %359 = vmatpush1.msra.mxu0 0.0
      %360 = vmatprep.subr.mxu0 0.0
      %361 = vmatpush1.msra.mxu0 0.0
      %362 = vmatprep.subr.mxu0 0.0
      %363 = vmatpush1.msra.mxu0 0.0
      %364 = vmatprep.subr.mxu0 0.0
      %365 = vmatpush1.msra.mxu0 0.0
      %366 = vmatprep.subr.mxu0 0.0
      %367 = vmatpush1.msra.mxu0 0.0
      %368 = vmatprep.subr.mxu0 0.0
      %369 = vmatpush1.msra.mxu0 0.0
      %370 = vmatprep.subr.mxu0 0.0
      %371 = vmatpush1.msra.mxu0 0.0
      %372 = vmatprep.subr.mxu0 0.0
      %373 = vmatpush1.msra.mxu0 0.0
      %374 = vmatprep.subr.mxu0 0.0
      %375 = vmatpush1.msra.mxu0 0.0
      %376 = vmatprep.subr.mxu0 0.0
      %377 = vmatpush1.msra.mxu0 0.0
      %378 = vmatprep.subr.mxu0 0.0
      %379 = vmatpush1.msra.mxu0 0.0
      %380 = vmatprep.subr.mxu0 0.0
      %381 = vmatpush1.msra.mxu0 0.0
      %382 = vmatprep.subr.mxu0 0.0
      %383 = vmatpush1.msra.mxu0 0.0
      %384 = vmatprep.mubr.f32.mxu0 0.0
      %385 = vmatmul.mubr.f32.gmra.mrb[0].mxu0 %v273
      %v386 = vpop.f32.mrb[0].mxu0
      %v387 = vadd.f32 %v269, %v386
      %v388 = vpop.f32.mrb[0].mxu0
      %389 = vmatprep.mubr.f32.mxu0 0.0
      %390 = vmatmul.mubr.f32.gmra.mrb[0].mxu0 %v276
      %v391 = vpop.f32.mrb[0].mxu0
      %v392 = vadd.f32 %v269, %v391
      %v393 = vpop.f32.mrb[0].mxu0
      %394 = vmatprep.mubr.f32.mxu0 0.0
      %395 = vmatmul.mubr.f32.gmra.mrb[0].mxu0 %v279
      %v396 = vpop.f32.mrb[0].mxu0
      %v397 = vadd.f32 %v269, %v396
      %v398 = vpop.f32.mrb[0].mxu0
      %399 = vmatprep.mubr.f32.mxu0 0.0
      %400 = vmatmul.mubr.f32.gmra.mrb[0].mxu0 %v282
      %v401 = vpop.f32.mrb[0].mxu0
      %v402 = vadd.f32 %v269, %v401
      %v403 = vpop.f32.mrb[0].mxu0
      %404 = vmatprep.mubr.f32.mxu0 0.0
      %405 = vmatmul.mubr.f32.gmra.mrb[0].mxu0 %v285
      %v406 = vpop.f32.mrb[0].mxu0
      %v407 = vadd.f32 %v269, %v406
      %v408 = vpop.f32.mrb[0].mxu0
      %409 = vmatprep.mubr.f32.mxu0 0.0
      %410 = vmatmul.mubr.f32.gmra.mrb[0].mxu0 %v288
      %v411 = vpop.f32.mrb[0].mxu0
      %v412 = vadd.f32 %v269, %v411
      %v413 = vpop.f32.mrb[0].mxu0
      %414 = vmatprep.mubr.f32.mxu0 0.0
      %415 = vmatmul.mubr.f32.gmra.mrb[0].mxu0 %v291
      %v416 = vpop.f32.mrb[0].mxu0
      %v417 = vadd.f32 %v269, %v416
      %v418 = vpop.f32.mrb[0].mxu0
      %419 = vmatprep.mubr.f32.mxu0 0.0
      %420 = vmatmul.mubr.f32.gmra.mrb[0].mxu0 %v294
      %v421 = vpop.f32.mrb[0].mxu0
      %v422 = vadd.f32 %v269, %v421
      %v423 = vpop.f32.mrb[0].mxu0
      %424 = vmatprep.mubr.f32.mxu0 0.0
      %425 = vmatmul.mubr.f32.gmra.mrb[0].mxu0 %v297
      %v426 = vpop.f32.mrb[0].mxu0
      %v427 = vadd.f32 %v269, %v426
      %v428 = vpop.f32.mrb[0].mxu0
      %429 = vmatprep.mubr.f32.mxu0 0.0
      %430 = vmatmul.mubr.f32.gmra.mrb[0].mxu0 %v300
      %v431 = vpop.f32.mrb[0].mxu0
      %v432 = vadd.f32 %v269, %v431
      %v433 = vpop.f32.mrb[0].mxu0
      %434 = vmatprep.mubr.f32.mxu0 0.0
      %435 = vmatmul.mubr.f32.gmra.mrb[0].mxu0 %v303
      %v436 = vpop.f32.mrb[0].mxu0
      %v437 = vadd.f32 %v269, %v436
      %v438 = vpop.f32.mrb[0].mxu0
      %439 = vmatprep.mubr.f32.mxu0 0.0
      %440 = vmatmul.mubr.f32.gmra.mrb[0].mxu0 %v306
      %v441 = vpop.f32.mrb[0].mxu0
      %v442 = vadd.f32 %v269, %v441
      %v443 = vpop.f32.mrb[0].mxu0
      %444 = vmatprep.mubr.f32.mxu0 0.0
      %445 = vmatmul.mubr.f32.gmra.mrb[0].mxu0 %v309
      %v446 = vpop.f32.mrb[0].mxu0
      %v447 = vadd.f32 %v269, %v446
      %v448 = vpop.f32.mrb[0].mxu0
      %449 = vmatprep.mubr.f32.mxu0 0.0
      %450 = vmatmul.mubr.f32.gmra.mrb[0].mxu0 %v312
      %v451 = vpop.f32.mrb[0].mxu0
      %v452 = vadd.f32 %v269, %v451
      %v453 = vpop.f32.mrb[0].mxu0
      %454 = vmatprep.mubr.f32.mxu0 0.0
      %455 = vmatmul.mubr.f32.gmra.mrb[0].mxu0 %v315
      %v456 = vpop.f32.mrb[0].mxu0
      %v457 = vadd.f32 %v269, %v456
      %v458 = vpop.f32.mrb[0].mxu0
      %459 = vmatprep.mubr.f32.mxu0 0.0
      %460 = vmatmul.mubr.f32.gmra.mrb[0].mxu0 %v318
      %v461 = vpop.f32.mrb[0].mxu0
      %v462 = vadd.f32 %v269, %v461
      %v463 = vpop.f32.mrb[0].mxu0
      %464 = vdwg.mxu0
      %v465 = vmax.f32 %v387, 0.0
      %v466 = vmax.f32 %v392, 0.0
      %v467 = vmax.f32 %v397, 0.0
      %v468 = vmax.f32 %v402, 0.0
      %v469 = vmax.f32 %v407, 0.0
      %v470 = vmax.f32 %v412, 0.0
      %v471 = vmax.f32 %v417, 0.0
      %v472 = vmax.f32 %v422, 0.0
      %v473 = vmax.f32 %v427, 0.0
      %v474 = vmax.f32 %v432, 0.0
      %v475 = vmax.f32 %v437, 0.0
      %v476 = vmax.f32 %v442, 0.0
      %v477 = vmax.f32 %v447, 0.0
      %v478 = vmax.f32 %v452, 0.0
      %v479 = vmax.f32 %v457, 0.0
      %v480 = vmax.f32 %v462, 0.0
      %v481 = vld [vmem:[%s3] sm:$0xff]
      %v482 = vld [vmem:[%s3 + $0x8] sm:$0xff]
      %v483 = vld [vmem:[%s3 + $0x10] sm:$0xff]
      %v484 = vld [vmem:[%s3 + $0x18] sm:$0xff]
      %v485 = vld [vmem:[%s4] sm:$0x1]
      %v487 = vlaneseq
      %v488 = vshrl.u32 %v487, 7
      %v489 = vsub.s32 0, %v488
      %v490 = vrot.slane %v485, %v489
      %v493 = vsel %vm271, %v465, 0
      %v496 = vsel %vm271, %v466, 0
      %v499 = vsel %vm271, %v467, 0
      %v502 = vsel %vm271, %v468, 0
      %v505 = vsel %vm271, %v469, 0
      %v508 = vsel %vm271, %v470, 0
      %v511 = vsel %vm271, %v471, 0
      %v514 = vsel %vm271, %v472, 0
      %v517 = vsel %vm271, %v473, 0
      %v520 = vsel %vm271, %v474, 0
      %v523 = vsel %vm271, %v475, 0
      %v526 = vsel %vm271, %v476, 0
      %v529 = vsel %vm271, %v477, 0
      %v532 = vsel %vm271, %v478, 0
      %v535 = vsel %vm271, %v479, 0
      %v538 = vsel %vm271, %v480, 0
      %540 = vmatprep.subr.mxu0 0.0
      %541 = vmatpush1.msra.mxu0 %v481
      %542 = vmatprep.subr.mxu0 0.0
      %543 = vmatpush1.msra.mxu0 %v482
      %544 = vmatprep.subr.mxu0 0.0
      %545 = vmatpush1.msra.mxu0 %v483
      %546 = vmatprep.subr.mxu0 0.0
      %547 = vmatpush1.msra.mxu0 %v484
      %548 = vmatprep.subr.mxu0 0.0
      %549 = vmatpush1.msra.mxu0 0.0
      %550 = vmatprep.subr.mxu0 0.0
      %551 = vmatpush1.msra.mxu0 0.0
      %552 = vmatprep.subr.mxu0 0.0
      %553 = vmatpush1.msra.mxu0 0.0
      %554 = vmatprep.subr.mxu0 0.0
      %555 = vmatpush1.msra.mxu0 0.0
      %556 = vmatprep.subr.mxu0 0.0
      %557 = vmatpush1.msra.mxu0 0.0
      %558 = vmatprep.subr.mxu0 0.0
      %559 = vmatpush1.msra.mxu0 0.0
      %560 = vmatprep.subr.mxu0 0.0
      %561 = vmatpush1.msra.mxu0 0.0
      %562 = vmatprep.subr.mxu0 0.0
      %563 = vmatpush1.msra.mxu0 0.0
      %564 = vmatprep.subr.mxu0 0.0
      %565 = vmatpush1.msra.mxu0 0.0
      %566 = vmatprep.subr.mxu0 0.0
      %567 = vmatpush1.msra.mxu0 0.0
      %568 = vmatprep.subr.mxu0 0.0
      %569 = vmatpush1.msra.mxu0 0.0
      %570 = vmatprep.subr.mxu0 0.0
      %571 = vmatpush1.msra.mxu0 0.0
      %572 = vmatprep.subr.mxu0 0.0
      %573 = vmatpush1.msra.mxu0 0.0
      %574 = vmatprep.subr.mxu0 0.0
      %575 = vmatpush1.msra.mxu0 0.0
      %576 = vmatprep.subr.mxu0 0.0
      %577 = vmatpush1.msra.mxu0 0.0
      %578 = vmatprep.subr.mxu0 0.0
      %579 = vmatpush1.msra.mxu0 0.0
      %580 = vmatprep.subr.mxu0 0.0
      %581 = vmatpush1.msra.mxu0 0.0
      %582 = vmatprep.subr.mxu0 0.0
      %583 = vmatpush1.msra.mxu0 0.0
      %584 = vmatprep.subr.mxu0 0.0
      %585 = vmatpush1.msra.mxu0 0.0
      %586 = vmatprep.subr.mxu0 0.0
      %587 = vmatpush1.msra.mxu0 0.0
      %588 = vmatprep.subr.mxu0 0.0
      %589 = vmatpush1.msra.mxu0 0.0
      %590 = vmatprep.subr.mxu0 0.0
      %591 = vmatpush1.msra.mxu0 0.0
      %592 = vmatprep.subr.mxu0 0.0
      %593 = vmatpush1.msra.mxu0 0.0
      %594 = vmatprep.subr.mxu0 0.0
      %595 = vmatpush1.msra.mxu0 0.0
      %596 = vmatprep.subr.mxu0 0.0
      %597 = vmatpush1.msra.mxu0 0.0
      %598 = vmatprep.subr.mxu0 0.0
      %599 = vmatpush1.msra.mxu0 0.0
      %600 = vmatprep.subr.mxu0 0.0
      %601 = vmatpush1.msra.mxu0 0.0
      %602 = vmatprep.subr.mxu0 0.0
      %603 = vmatpush1.msra.mxu0 0.0
      %604 = vmatprep.mubr.f32.mxu0 0.0
      %605 = vmatmul.mubr.f32.gmra.mrb[0].mxu0 %v493
      %v606 = vpop.f32.mrb[0].mxu0
      %v607 = vadd.f32 %v490, %v606
      %v608 = vpop.f32.mrb[0].mxu0
      %609 = vmatprep.mubr.f32.mxu0 0.0
      %610 = vmatmul.mubr.f32.gmra.mrb[0].mxu0 %v496
      %v611 = vpop.f32.mrb[0].mxu0
      %v612 = vadd.f32 %v490, %v611
      %v613 = vpop.f32.mrb[0].mxu0
      %614 = vmatprep.mubr.f32.mxu0 0.0
      %615 = vmatmul.mubr.f32.gmra.mrb[0].mxu0 %v499
      %v616 = vpop.f32.mrb[0].mxu0
      %v617 = vadd.f32 %v490, %v616
      %v618 = vpop.f32.mrb[0].mxu0
      %619 = vmatprep.mubr.f32.mxu0 0.0
      %620 = vmatmul.mubr.f32.gmra.mrb[0].mxu0 %v502
      %v621 = vpop.f32.mrb[0].mxu0
      %v622 = vadd.f32 %v490, %v621
      %v623 = vpop.f32.mrb[0].mxu0
      %624 = vmatprep.mubr.f32.mxu0 0.0
      %625 = vmatmul.mubr.f32.gmra.mrb[0].mxu0 %v505
      %v626 = vpop.f32.mrb[0].mxu0
      %v627 = vadd.f32 %v490, %v626
      %v628 = vpop.f32.mrb[0].mxu0
      %629 = vmatprep.mubr.f32.mxu0 0.0
      %630 = vmatmul.mubr.f32.gmra.mrb[0].mxu0 %v508
      %v631 = vpop.f32.mrb[0].mxu0
      %v632 = vadd.f32 %v490, %v631
      %v633 = vpop.f32.mrb[0].mxu0
      %634 = vmatprep.mubr.f32.mxu0 0.0
      %635 = vmatmul.mubr.f32.gmra.mrb[0].mxu0 %v511
      %v636 = vpop.f32.mrb[0].mxu0
      %v637 = vadd.f32 %v490, %v636
      %v638 = vpop.f32.mrb[0].mxu0
      %639 = vmatprep.mubr.f32.mxu0 0.0
      %640 = vmatmul.mubr.f32.gmra.mrb[0].mxu0 %v514
      %v641 = vpop.f32.mrb[0].mxu0
      %v642 = vadd.f32 %v490, %v641
      %v643 = vpop.f32.mrb[0].mxu0
      %644 = vmatprep.mubr.f32.mxu0 0.0
      %645 = vmatmul.mubr.f32.gmra.mrb[0].mxu0 %v517
      %v646 = vpop.f32.mrb[0].mxu0
      %v647 = vadd.f32 %v490, %v646
      %v648 = vpop.f32.mrb[0].mxu0
      %649 = vmatprep.mubr.f32.mxu0 0.0
      %650 = vmatmul.mubr.f32.gmra.mrb[0].mxu0 %v520
      %v651 = vpop.f32.mrb[0].mxu0
      %v652 = vadd.f32 %v490, %v651
      %v653 = vpop.f32.mrb[0].mxu0
      %654 = vmatprep.mubr.f32.mxu0 0.0
      %655 = vmatmul.mubr.f32.gmra.mrb[0].mxu0 %v523
      %v656 = vpop.f32.mrb[0].mxu0
      %v657 = vadd.f32 %v490, %v656
      %v658 = vpop.f32.mrb[0].mxu0
      %659 = vmatprep.mubr.f32.mxu0 0.0
      %660 = vmatmul.mubr.f32.gmra.mrb[0].mxu0 %v526
      %v661 = vpop.f32.mrb[0].mxu0
      %v662 = vadd.f32 %v490, %v661
      %v663 = vpop.f32.mrb[0].mxu0
      %664 = vmatprep.mubr.f32.mxu0 0.0
      %665 = vmatmul.mubr.f32.gmra.mrb[0].mxu0 %v529
      %v666 = vpop.f32.mrb[0].mxu0
      %v667 = vadd.f32 %v490, %v666
      %v668 = vpop.f32.mrb[0].mxu0
      %669 = vmatprep.mubr.f32.mxu0 0.0
      %670 = vmatmul.mubr.f32.gmra.mrb[0].mxu0 %v532
      %v671 = vpop.f32.mrb[0].mxu0
      %v672 = vadd.f32 %v490, %v671
      %v673 = vpop.f32.mrb[0].mxu0
      %674 = vmatprep.mubr.f32.mxu0 0.0
      %675 = vmatmul.mubr.f32.gmra.mrb[0].mxu0 %v535
      %v676 = vpop.f32.mrb[0].mxu0
      %v677 = vadd.f32 %v490, %v676
      %v678 = vpop.f32.mrb[0].mxu0
      %679 = vmatprep.mubr.f32.mxu0 0.0
      %680 = vmatmul.mubr.f32.gmra.mrb[0].mxu0 %v538
      %v681 = vpop.f32.mrb[0].mxu0
      %v682 = vadd.f32 %v490, %v681
      %v683 = vpop.f32.mrb[0].mxu0
      %684 = vdwg.mxu0
      %v685 = vadd.f32 %v228, %v607
      %v686 = vadd.f32 %v229, %v612
      %v687 = vadd.f32 %v230, %v617
      %v688 = vadd.f32 %v231, %v622
      %v689 = vadd.f32 %v232, %v627
      %v690 = vadd.f32 %v233, %v632
      %v691 = vadd.f32 %v234, %v637
      %v692 = vadd.f32 %v235, %v642
      %v693 = vadd.f32 %v236, %v647
      %v694 = vadd.f32 %v237, %v652
      %v695 = vadd.f32 %v238, %v657
      %v696 = vadd.f32 %v239, %v662
      %v697 = vadd.f32 %v240, %v667
      %v698 = vadd.f32 %v241, %v672
      %v699 = vadd.f32 %v242, %v677
      %v700 = vadd.f32 %v243, %v682
      %701 = vst.msk [vmem:[%s226] sm:$0xff] %vm271, %v685
      %702 = vst.msk [vmem:[%s226 + $0x8] sm:$0xff] %vm271, %v686
      %703 = vst.msk [vmem:[%s226 + $0x10] sm:$0xff] %vm271, %v687
      %704 = vst.msk [vmem:[%s226 + $0x18] sm:$0xff] %vm271, %v688
      %705 = vst.msk [vmem:[%s226 + $0x20] sm:$0xff] %vm271, %v689
      %706 = vst.msk [vmem:[%s226 + $0x28] sm:$0xff] %vm271, %v690
      %707 = vst.msk [vmem:[%s226 + $0x30] sm:$0xff] %vm271, %v691
      %708 = vst.msk [vmem:[%s226 + $0x38] sm:$0xff] %vm271, %v692
      %709 = vst.msk [vmem:[%s226 + $0x40] sm:$0xff] %vm271, %v693
      %710 = vst.msk [vmem:[%s226 + $0x48] sm:$0xff] %vm271, %v694
      %711 = vst.msk [vmem:[%s226 + $0x50] sm:$0xff] %vm271, %v695
      %712 = vst.msk [vmem:[%s226 + $0x58] sm:$0xff] %vm271, %v696
      %713 = vst.msk [vmem:[%s226 + $0x60] sm:$0xff] %vm271, %v697
      %714 = vst.msk [vmem:[%s226 + $0x68] sm:$0xff] %vm271, %v698
      %715 = vst.msk [vmem:[%s226 + $0x70] sm:$0xff] %vm271, %v699
      %716 = vst.msk [vmem:[%s226 + $0x78] sm:$0xff] %vm271, %v700
      %s717 = smul.u32 16, %s16
      %p718 = scmp.lt.s32.totalorder %s717, 31
      %s719 = scalar_select %p718, %s717, 31
      %s720 = smul.addr %s719, 8
      %s721 = scalar_lea.vmem %s5, %s720
      // Predicated region
      $region41: #{masked_residual_block.1} parent=39 // pred_check
        %p722 = pneg %p144
      $region42: #{masked_residual_block.1} parent=39 // pred_check_branch
        %724 = sbr.rel (%p722) target = $region44
      $region43: #{masked_residual_block.1} parent=39 // pred_region
        %s725 = smul.u32 16, %s16
      $region44: #{masked_residual_block.1} parent=39 // pred_fallthru
        _
    $region40: #{masked_residual_block.1} parent=5 // pred_fallthru
      _
    %p726 = scmp.le.s32.totalorder 2, %s11
    // Predicated region
    $region45: #{masked_residual_block.1} parent=5 // pred_check
      %p727 = pneg %p726
    $region46: #{masked_residual_block.1} parent=5 // pred_check_branch
      %729 = sbr.rel (%p727) target = $region48
    $region47: #{masked_residual_block.1} parent=5 // pred_region
      %s730 = ssub.s32 %s11, 2
      // Predicated region
      $region49: #{masked_residual_block.1} parent=47 // pred_check
        %p731 = pneg %p150
      $region50: #{masked_residual_block.1} parent=47 // pred_check_branch
        %733 = sbr.rel (%p731) target = $region52
      $region51: #{masked_residual_block.1} parent=47 // pred_region
        %s734 = smul.u32 16, %s17
        %p735 = scmp.lt.s32.totalorder %s734, 31
        %s736 = scalar_select %p735, %s734, 31
        %s737 = smul.addr %s736, 8
        %s738 = scalar_lea.vmem %s5, %s737
      $region52: #{masked_residual_block.1} parent=47 // pred_fallthru
        _
    $region48: #{masked_residual_block.1} parent=5 // pred_fallthru
      _
  $region6: #{masked_residual_block.1} parent=0 // loop_footer
    %s15 = sadd.s32 1, %s11
  $region7: #{masked_residual_block.1} parent=0 // loop_footer_branch
    %10 = sbr.rel target = $region3
  $region8: #{masked_residual_block.1} parent=0 // loop_exit
    _

</llo_original>
